<compile_context>
chip_gen: v6e
topology: v6e:2x2x1
jax: 0.10.0
libtpu: 0.0.40
codegen_flags: <defaults>
</compile_context>

<pallas_src>
import functools
import math

import jax
import jax.numpy as jnp
from jax.experimental import pallas as pl
from jax.experimental.pallas import tpu as pltpu


def _round_up(v, m):
    return ((v + m - 1) // m) * m


def _vmem_limit_bytes():
    """~0.75x of the local chip's VMEM capacity (falls back to 48 MiB: safe on v7x)."""
    cap = 64 * 1024 * 1024
    try:
        info = pltpu.get_tpu_info()
        cap = int(getattr(info, "vmem_capacity_bytes", cap)) or cap
    except Exception:
        pass
    return (cap * 3) // 4


def _pick_rows_block(rows, fits, candidates=(2048, 1024, 512, 256, 128)):
    """(padded_rows, block): large pipelined row blocks; pad rather than fall back
    to an un-pipelined full-dim block when `rows` does not divide evenly."""
    for cand in candidates:
        if rows % cand == 0 and fits(cand):
            return rows, cand
    if rows <= candidates[-1]:
        rp = _round_up(rows, 8)
        return rp, rp
    rp = _round_up(rows, 128)
    for cand in candidates:
        if rp % cand == 0 and fits(cand):
            return rp, cand
    return rp, 128


# --------------------------------------------------------------------------------------
# Kernel 1: Chebyshev polynomial stack, emitted directly in concatenated layout
#   T_cat[:, (s*(K-1)+k-1)*N : ...] = T_{s,k}   (non-identity polys only; built once).
# --------------------------------------------------------------------------------------
def _cheb_concat_kernel(s_ref, t_ref, *, cheb_k, n):
    s_blk = s_ref.shape[0]
    for si in range(s_blk):
        s = s_ref[si].astype(jnp.float32)
        base = si * (cheb_k - 1) * n
        t_ref[:, pl.ds(base, n)] = s.astype(t_ref.dtype)                 # T_1 = S
        if cheb_k >= 3:
            # Identity built on the VPU (iota + compare); never fed to the MXU.
            row = jax.lax.broadcasted_iota(jnp.int32, (n, n), 0)
            col = jax.lax.broadcasted_iota(jnp.int32, (n, n), 1)
            prev2 = jnp.where(row == col, 1.0, 0.0).astype(jnp.float32)  # T_0 = I
            prev1 = s
            for k in range(2, cheb_k):
                cur = 2.0 * jnp.dot(s, prev1, preferred_element_type=jnp.float32) - prev2
                t_ref[:, pl.ds(base + (k - 1) * n, n)] = cur.astype(t_ref.dtype)
                prev2, prev1 = prev1, cur


# --------------------------------------------------------------------------------------
# Kernel 2: tap projection V = x @ [W_ident | W_1 | ... | W_{n_poly}]  (one matmul
#   covering every batch element and every tap; lane-dense padded output slab).
# --------------------------------------------------------------------------------------
def _vproj_kernel(x_ref, w_ref, o_ref, *, compute_dtype):
    o_ref[...] = jnp.dot(
        x_ref[...].astype(compute_dtype), w_ref[...],
        preferred_element_type=jnp.float32,
    ).astype(o_ref.dtype)


# --------------------------------------------------------------------------------------
# Kernel 3: graph conv   out = bias + V_ident + T_cat @ V_cat
#   Deep-K matmul, batch folded into lanes, f32 VMEM accumulator; K axis only tiled
#   when VMEM requires it (then 'arbitrary', innermost).
# --------------------------------------------------------------------------------------
def _gconv_kernel(t_ref, v_ref, vi_ref, b_ref, o_ref, acc_ref):
    k = pl.program_id(1)

    @pl.when(k == 0)
    def _init():
        acc_ref[...] = vi_ref[...].astype(jnp.float32) + b_ref[...].astype(jnp.float32)

    acc_ref[...] += jnp.dot(t_ref[...], v_ref[...], preferred_element_type=jnp.float32)

    @pl.when(k == pl.num_programs(1) - 1)
    def _store():
        o_ref[...] = acc_ref[...].astype(o_ref.dtype)


# --------------------------------------------------------------------------------------
# Forward wrapper (layout plumbing + geometry decisions only).
# --------------------------------------------------------------------------------------
def agcn_forward(x, supports, weights, bias, cheb_k, compute_dtype=jnp.bfloat16):
    """x: [B, N, dim_in]; supports: [2, N, N]; weights: [2*cheb_k*dim_in, dim_out]."""
    assert cheb_k >= 2, "AGCN forward assumes cheb_k >= 2 (it always emits [I, S])."
    b, n, c = x.shape
    o = weights.shape[1]
    assert weights.shape[0] == 2 * cheb_k * c, "weights shape mismatch vs 2*cheb_k*dim_in"
    assert supports.shape == (2, n, n)

    vmem_limit = _vmem_limit_bytes()
    cbytes = jnp.dtype(compute_dtype).itemsize
    obytes = jnp.dtype(x.dtype).itemsize

    n_poly = 2 * (cheb_k - 1)          # non-identity polynomials across both supports
    q = n_poly + 1                     # + the folded identity tap

    # ---- padded geometry: lane-dense stores, (8,128) blocks, >=2 m-blocks on v7x ----
    n_p = _round_up(n, 128) if n >= 256 else n
    o_step = 128 // math.gcd(b, 128)
    o_p = _round_up(o, o_step)         # b * o_p is a multiple of 128
    bo_p = b * o_p
    qo_p = q * o_p
    qo_pp = _round_up(qo_p, 128)       # lane-dense vproj output slab
    l_tot = n_poly * n_p               # gconv contraction depth

    # ---- pad inputs (zero padding is exact: padded rows/cols contribute zero) ----
    supports_p = supports
    x_p = x
    if n_p > n:
        supports_p = jnp.pad(supports, ((0, 0), (0, n_p - n), (0, n_p - n)))
        x_p = jnp.pad(x, ((0, 0), (0, n_p - n), (0, 0)))

    # ---- 1. Chebyshev stack, concatenated [N, n_poly*N] layout, built once ----------
    per_sup = (cheb_k - 1) * n_p
    if per_sup % 128 == 0:
        cheb_grid = (2,)                                      # split supports over TCs
        cheb_in = pl.BlockSpec((1, n_p, n_p), lambda s: (s, 0, 0))
        cheb_out = pl.BlockSpec((n_p, per_sup), lambda s: (0, s))
    else:
        cheb_grid = (1,)                                      # tiny graphs: one call
        cheb_in = pl.BlockSpec((2, n_p, n_p), lambda s: (0, 0, 0))
        cheb_out = pl.BlockSpec((n_p, l_tot), lambda s: (0, 0))
    # TODO(synk): for very large N on v7x (64 MiB VMEM) this once-only kernel should
    # additionally split its output per polynomial / row block.
    t_cat = pl.pallas_call(
        functools.partial(_cheb_concat_kernel, cheb_k=cheb_k, n=n_p),
        out_shape=jax.ShapeDtypeStruct((n_p, l_tot), compute_dtype),
        grid=cheb_grid,
        in_specs=[cheb_in],
        out_specs=cheb_out,
        compiler_params=pltpu.CompilerParams(
            dimension_semantics=("parallel",), vmem_limit_bytes=vmem_limit),
    )(supports_p)

    # ---- 2. Weight / bias re-arrangement (tiny, layout plumbing) ---------------------
    w = weights.reshape(2 * cheb_k, c, o)
    if o_p > o:
        w = jnp.pad(w, ((0, 0), (0, 0), (0, o_p - o)))
    w_ident = w[0] + w[cheb_k]                                        # fold both I taps
    w_rest = jnp.concatenate([w[1:cheb_k], w[cheb_k + 1:]], axis=0)   # [n_poly, C, O_p]
    w_all = jnp.concatenate([w_ident[None], w_rest], axis=0)          # [Q, C, O_p]
    w_cat = jnp.transpose(w_all, (1, 0, 2)).reshape(c, qo_p)
    if qo_pp > qo_p:
        w_cat = jnp.pad(w_cat, ((0, 0), (0, qo_pp - qo_p)))
    w_cat = w_cat.astype(compute_dtype)
    bias_p = bias.astype(jnp.float32)
    if o_p > o:
        bias_p = jnp.pad(bias_p, (0, o_p - o))
    bias_fold = jnp.tile(bias_p, b).reshape(1, bo_p)

    # ---- 3. Tap projection: one [rows, C] @ [C, Q*O_p] matmul for everything ---------
    rows = b * n_p

    def _vproj_fits(blk):
        return (2 * (blk * c * obytes + blk * qo_pp * cbytes)
                + 2 * c * qo_pp * cbytes) <= vmem_limit

    rows_p, tm_v = _pick_rows_block(rows, _vproj_fits)
    x_flat = x_p.reshape(rows, c)
    if rows_p > rows:
        x_flat = jnp.pad(x_flat, ((0, rows_p - rows), (0, 0)))
    v_all = pl.pallas_call(
        functools.partial(_vproj_kernel, compute_dtype=compute_dtype),
        out_shape=jax.ShapeDtypeStruct((rows_p, qo_pp), compute_dtype),
        grid=(rows_p // tm_v,),
        in_specs=[pl.BlockSpec((tm_v, c), lambda i: (i, 0)),
                  pl.BlockSpec((c, qo_pp), lambda i: (0, 0))],
        out_specs=pl.BlockSpec((tm_v, qo_pp), lambda i: (i, 0)),
        compiler_params=pltpu.CompilerParams(
            dimension_semantics=("parallel",), vmem_limit_bytes=vmem_limit),
    )(x_flat, w_cat)

    # ---- 4. Fold the batch into lanes (wrapper-side layout plumbing) -----------------
    # TODO(synk): this transpose and the final un-fold are unfused XLA passes over
    # V / out; for extremely memory-bound configs fold them into kernels 2/3 via a
    # per-batch grid axis.
    v_fold = (v_all[:rows, :qo_p]
              .reshape(b, n_p, q, o_p)
              .transpose(2, 1, 0, 3)
              .reshape(q, n_p, bo_p))
    v_ident = v_fold[0]                                   # [N_p, B*O_p] identity tap
    v_cat = v_fold[1:].reshape(l_tot, bo_p)               # [n_poly*N_p, B*O_p]

    # ---- 5. gconv: out = bias + V_ident + T_cat @ V_cat  (deep-K, lane-dense) --------
    if n_p >= 256:
        tm = 256 if (n_p % 256 == 0 and n_p // 256 >= 2) else 128
    else:
        tm = n_p

    def _gconv_bytes(tk):
        return (2 * tm * tk * cbytes            # T blocks (double-buffered)
                + 2 * tk * bo_p * cbytes        # V blocks
                + 2 * tm * bo_p * cbytes        # V_ident blocks
                + 2 * bo_p * 4                  # bias
                + 2 * tm * bo_p * obytes        # output blocks
                + tm * bo_p * 4)                # f32 accumulator scratch

    tk = l_tot                                  # prefer V fully VMEM-resident (1 fetch)
    while _gconv_bytes(tk) > vmem_limit and tk % 2 == 0 and (tk // 2) % 128 == 0:
        tk //= 2                                # v7x: tile the contraction instead
    # TODO(synk): if even tk=128 does not fit (enormous B*O), additionally tile B*O.

    out_fold = pl.pallas_call(
        _gconv_kernel,
        out_shape=jax.ShapeDtypeStruct((n_p, bo_p), x.dtype),
        grid=(n_p // tm, l_tot // tk),
        in_specs=[
            pl.BlockSpec((tm, tk), lambda m, k: (m, k)),     # T_cat row / K block
            pl.BlockSpec((tk, bo_p), lambda m, k: (k, 0)),   # V_cat (resident if tk==l_tot)
            pl.BlockSpec((tm, bo_p), lambda m, k: (m, 0)),   # identity contribution
            pl.BlockSpec((1, bo_p), lambda m, k: (0, 0)),    # batch-tiled bias
        ],
        out_specs=pl.BlockSpec((tm, bo_p), lambda m, k: (m, 0)),  # resident across k
        scratch_shapes=[pltpu.VMEM((tm, bo_p), jnp.float32)],
        compiler_params=pltpu.CompilerParams(
            dimension_semantics=("parallel", "arbitrary"), vmem_limit_bytes=vmem_limit),
    )(t_cat, v_cat, v_ident, bias_fold)

    # ---- 6. Un-fold the lane-packed batch, drop padding ------------------------------
    out = out_fold.reshape(n_p, b, o_p).transpose(1, 0, 2)
    return out[:, :n, :o]


def agcn_reference(x, supports, weights, bias, cheb_k):
    """Plain-JAX mirror of the PyTorch forward, for verification."""
    n = supports.shape[1]
    support_set = []
    for si in range(2):
        s = supports[si]
        ks = [jnp.eye(n, dtype=jnp.float32), s]
        for _ in range(2, cheb_k):
            ks.append(2.0 * (s @ ks[-1]) - ks[-2])
        support_set.extend(ks)
    x_g = [jnp.einsum("nm,bmc->bnc", s, x) for s in support_set]
    x_g = jnp.concatenate(x_g, axis=-1)
    return jnp.einsum("bni,io->bno", x_g, weights) + bias


if __name__ == "__main__":
    B, N, DIM_IN, DIM_OUT, CHEB_K = 2, 16, 4, 8, 3

    key = jax.random.PRNGKey(0)
    k_x, k_s, k_w = jax.random.split(key, 3)

    x = jax.random.normal(k_x, (B, N, DIM_IN), dtype=jnp.float32)
    supports = jax.random.normal(k_s, (2, N, N), dtype=jnp.float32) * 0.1

    # Deterministic "xavier_normal_" init: std = sqrt(2 / (fan_in + fan_out)).
    fan_sum = 2 * CHEB_K * DIM_IN + DIM_OUT
    std = math.sqrt(2.0 / fan_sum)
    weights = jax.random.normal(k_w, (2 * CHEB_K * DIM_IN, DIM_OUT), jnp.float32) * std
    bias = jnp.zeros((DIM_OUT,), dtype=jnp.float32)  # nn.init.constant_(bias, 0)

    ref = agcn_reference(x, supports, weights, bias, CHEB_K)

    # Full-precision path: must match the reference tightly.
    out_f32 = jax.block_until_ready(
        agcn_forward(x, supports, weights, bias, CHEB_K, compute_dtype=jnp.float32))
    assert out_f32.shape == (B, N, DIM_OUT), out_f32.shape
    assert jnp.allclose(out_f32, ref, atol=1e-4, rtol=1e-4), "f32 mismatch vs reference"

    # Default bf16 MXU-operand path (f32 accumulate): loose tolerance sanity check.
    out_bf16 = jax.block_until_ready(agcn_forward(x, supports, weights, bias, CHEB_K))
    assert out_bf16.shape == (B, N, DIM_OUT), out_bf16.shape
    assert jnp.allclose(out_bf16, ref, atol=1e-1, rtol=1e-1), "bf16 mismatch vs reference"

    print("KERNEL_OK")
</pallas_src>

<mosaic_0001>
module attributes {stable_mosaic.version = 11 : i64} {
  func.func @_cheb_concat_kernel(%arg0: i32, %arg1: memref<2x16x16xf32, #tpu.memory_space<vmem>>, %arg2: memref<16x64xf32, #tpu.memory_space<vmem>>) attributes {dimension_semantics = [#tpu.dimension_semantics<parallel>], iteration_bounds = array<i64: 1>, scalar_prefetch = 0 : i64, scratch_operands = 0 : i64, tpu.core_type = #tpu.core_type<tc>, window_params = [{pipeline_mode = #tpu.pipeline_mode<synchronous>, transform_indices = @transform_0, window_bounds = array<i64: 2, 16, 16>}, {pipeline_mode = #tpu.pipeline_mode<synchronous>, transform_indices = @transform_1, window_bounds = array<i64: 16, 64>}]} {
    %c0 = arith.constant 0 : index
    %c0_0 = arith.constant 0 : index
    %c0_1 = arith.constant 0 : index
    %0 = vector.load %arg1[%c0, %c0_0, %c0_1] : memref<2x16x16xf32, #tpu.memory_space<vmem>>, vector<1x16x16xf32>
    %1 = vector.shape_cast %0 : vector<1x16x16xf32> to vector<16x16xf32>
    %c0_2 = arith.constant 0 : index
    %c0_3 = arith.constant 0 : index
    %2 = vector.load %arg2[%c0_2, %c0_3] : memref<16x64xf32, #tpu.memory_space<vmem>>, vector<16x16xf32>
    tpu.vector_store %arg2[%c0_2, %c0_3], %1 {strides = array<i32>} : memref<16x64xf32, #tpu.memory_space<vmem>>, vector<16x16xf32>,
    %3 = tpu.iota {dimensions = array<i32: 0>} : vector<16x16xi32>
    %4 = tpu.iota {dimensions = array<i32: 1>} : vector<16x16xi32>
    %5 = arith.cmpi eq, %3, %4 : vector<16x16xi32>
    %cst = arith.constant 1.000000e+00 : f32
    %cst_4 = arith.constant 0.000000e+00 : f32
    %6 = vector.broadcast %cst : f32 to vector<16x16xf32>
    %7 = vector.broadcast %cst_4 : f32 to vector<16x16xf32>
    %8 = arith.select %5, %6, %7 : vector<16x16xi1>, vector<16x16xf32>
    %cst_5 = arith.constant dense<0.000000e+00> : vector<16x16xf32>
    %9 = tpu.matmul %1, %1, %cst_5 {dimension_numbers = #tpu.dot_dimension_numbers<[1], [0], [0], [1], [0, 0, 1, 1], [], []>} : vector<16x16xf32>, vector<16x16xf32>, vector<16x16xf32> -> vector<16x16xf32>
    %cst_6 = arith.constant 2.000000e+00 : f32
    %10 = vector.broadcast %cst_6 : f32 to vector<16x16xf32>
    %11 = arith.mulf %10, %9 : vector<16x16xf32>
    %12 = arith.subf %11, %8 : vector<16x16xf32>
    %c0_7 = arith.constant 0 : index
    %c16 = arith.constant 16 : index
    %13 = vector.load %arg2[%c0_7, %c16] : memref<16x64xf32, #tpu.memory_space<vmem>>, vector<16x16xf32>
    tpu.vector_store %arg2[%c0_7, %c16], %12 {strides = array<i32>} : memref<16x64xf32, #tpu.memory_space<vmem>>, vector<16x16xf32>,
    %c1 = arith.constant 1 : index
    %c0_8 = arith.constant 0 : index
    %c0_9 = arith.constant 0 : index
    %14 = vector.load %arg1[%c1, %c0_8, %c0_9] : memref<2x16x16xf32, #tpu.memory_space<vmem>>, vector<1x16x16xf32>
    %15 = vector.shape_cast %14 : vector<1x16x16xf32> to vector<16x16xf32>
    %c0_10 = arith.constant 0 : index
    %c32 = arith.constant 32 : index
    %16 = vector.load %arg2[%c0_10, %c32] : memref<16x64xf32, #tpu.memory_space<vmem>>, vector<16x16xf32>
    tpu.vector_store %arg2[%c0_10, %c32], %15 {strides = array<i32>} : memref<16x64xf32, #tpu.memory_space<vmem>>, vector<16x16xf32>,
    %17 = tpu.iota {dimensions = array<i32: 0>} : vector<16x16xi32>
    %18 = tpu.iota {dimensions = array<i32: 1>} : vector<16x16xi32>
    %19 = arith.cmpi eq, %17, %18 : vector<16x16xi32>
    %cst_11 = arith.constant 1.000000e+00 : f32
    %cst_12 = arith.constant 0.000000e+00 : f32
    %20 = vector.broadcast %cst_11 : f32 to vector<16x16xf32>
    %21 = vector.broadcast %cst_12 : f32 to vector<16x16xf32>
    %22 = arith.select %19, %20, %21 : vector<16x16xi1>, vector<16x16xf32>
    %cst_13 = arith.constant dense<0.000000e+00> : vector<16x16xf32>
    %23 = tpu.matmul %15, %15, %cst_13 {dimension_numbers = #tpu.dot_dimension_numbers<[1], [0], [0], [1], [0, 0, 1, 1], [], []>} : vector<16x16xf32>, vector<16x16xf32>, vector<16x16xf32> -> vector<16x16xf32>
    %cst_14 = arith.constant 2.000000e+00 : f32
    %24 = vector.broadcast %cst_14 : f32 to vector<16x16xf32>
    %25 = arith.mulf %24, %23 : vector<16x16xf32>
    %26 = arith.subf %25, %22 : vector<16x16xf32>
    %c0_15 = arith.constant 0 : index
    %c48 = arith.constant 48 : index
    %27 = vector.load %arg2[%c0_15, %c48] : memref<16x64xf32, #tpu.memory_space<vmem>>, vector<16x16xf32>
    tpu.vector_store %arg2[%c0_15, %c48], %26 {strides = array<i32>} : memref<16x64xf32, #tpu.memory_space<vmem>>, vector<16x16xf32>,
    return
  }
  func.func @transform_0(%arg0: i32) -> (i32, i32, i32) {
    %c0_i32 = arith.constant 0 : i32
    %c0_i32_0 = arith.constant 0 : i32
    %c0_i32_1 = arith.constant 0 : i32
    %c0_i32_2 = arith.constant 0 : i32
    return %c0_i32, %c0_i32_0, %c0_i32_1 : i32, i32, i32
  }
  func.func @transform_1(%arg0: i32) -> (i32, i32) {
    %c0_i32 = arith.constant 0 : i32
    %c0_i32_0 = arith.constant 0 : i32
    %c0_i32_1 = arith.constant 0 : i32
    return %c0_i32, %c0_i32_0 : i32, i32
  }
}

</mosaic_0001>

<llo_original>
// kernel: tpu_custom_call.1
$region0: #{tpu_custom_call.1}
  #allocation0 [shape = 'u32[]', space=smem, size = 0x4, offset = 0x4, fixed_abs, tag = 'smem constant byte address 0x4 - core index']
  #allocation1 [shape = 'u32[144,128]{1,0:T(1,128)}', space=vmem, size = 0x12000, scoped, tag = 'internal scratch']
  %s0 = inlined_call_operand.hbm [shape: f32[2,16,16], index: 0, kind: input, shape index: {}]
  %s1 = inlined_call_operand.hbm [shape: f32[16,64], index: 1, kind: output, shape index: {}]
  %s2 = sld [smem:[#allocation0]]
  $region18: #{tpu_custom_call.1} parent=0
    _
  %s4 = ssub.s32 1, %s2
  %s5 = scalar_select 0, %s4, %s2
  $region1: #{tpu_custom_call.1} parent=0
    #allocation2 [shape = 'u8[16384]{0}', space=vmem, size = 0x4000, scoped, tag = 'input window, operand 0, single buffered']
    #allocation3 [shape = 's32[1]{0}', space=sflag, size = 0x4, scoped, tag = 'scoped memory for tpu_custom_call.1']
    #allocation4 [shape = 's32[1]{0}', space=sflag, size = 0x4, scoped, tag = 'scoped memory for tpu_custom_call.1']
    #allocation5 [shape = 'u8[8192]{0}', space=vmem, size = 0x2000, scoped, tag = 'output window, operand 0, single buffered']
    %6 = vsyncpa [#allocation3], 0
    %7 = vsyncpa [#allocation4], 0
    // Predicated region
    $region2: #{tpu_custom_call.1} parent=1 // pred_check
      _
    $region3: #{tpu_custom_call.1} parent=1 // pred_check_branch
      %9 = sbr.rel (0) target = $region5
    $region4: #{tpu_custom_call.1} parent=1 // pred_region
      %s11 = ssub.s32 512, 512
      %12 = vsyncadd [#allocation3], %s11
      %s13 = sshll.u32 [#allocation2], 4
      %s14 = int_to_ptr.vmem [resolvable:$true] %s13
      %19 = dma.hbm_to_vmem [thread:$0]  %s0, 512, %s14, [#allocation3], 128, 128, 8
    $region5: #{tpu_custom_call.1} parent=1 // pred_fallthru
      _
    // Predicated region
    $region6: #{tpu_custom_call.1} parent=1 // pred_check
      _
    $region7: #{tpu_custom_call.1} parent=1 // pred_check_branch
      %21 = sbr.rel (0) target = $region9
    $region8: #{tpu_custom_call.1} parent=1 // pred_region
      %22 = dma.done [#allocation3], 512
    $region9: #{tpu_custom_call.1} parent=1 // pred_fallthru
      _
    %v23 = vld [vmem:[#allocation2] sm:$0xff]
    %v24 = vld [vmem:[#allocation2 + $0x8] sm:$0xff]
    %vm25 = vcmask 130048
    %26 = vst.msk [vmem:[#allocation5] sm:$0xff] %vm25, %v23
    %27 = vst.msk [vmem:[#allocation5 + $0x8] sm:$0xff] %vm25, %v24
    %v28 = vlaneseq
    %v29 = vshrl.u32 %v28, 7
    %v30 = vadd.s32 %v29, 8
    %v31 = vlaneseq
    %v32 = vand.u32 %v31, 127
    %vm33 = vcmp.eq.s32.totalorder %v29, %v32
    %vm34 = vcmp.eq.s32.totalorder %v30, %v32
    %v35 = vsel %vm33, 1.0, 0.0
    %v36 = vsel %vm34, 1.0, 0.0
    %v38 = vsel %vm25, %v23, 0
    %v41 = vsel %vm25, %v24, 0
    %43 = vmatprep.subr.mxu0 0.0
    %44 = vmatpush1.msra.mxu0 0.0
    %45 = vmatprep.subr.mxu0 0.0
    %46 = vmatpush1.msra.mxu0 0.0
    %47 = vmatprep.subr.mxu0 0.0
    %48 = vmatpush1.msra.mxu0 0.0
    %49 = vmatprep.subr.mxu0 0.0
    %50 = vmatpush1.msra.mxu0 0.0
    %51 = vmatprep.subr.mxu0 0.0
    %52 = vmatpush1.msra.mxu0 0.0
    %53 = vmatprep.subr.mxu0 0.0
    %54 = vmatpush1.msra.mxu0 0.0
    %55 = vmatprep.subr.mxu0 0.0
    %56 = vmatpush1.msra.mxu0 0.0
    %57 = vmatprep.subr.mxu0 0.0
    %58 = vmatpush1.msra.mxu0 0.0
    %59 = vmatprep.subr.mxu0 0.0
    %60 = vmatpush1.msra.mxu0 0.0
    %61 = vmatprep.subr.mxu0 0.0
    %62 = vmatpush1.msra.mxu0 0.0
    %63 = vmatprep.subr.mxu0 0.0
    %64 = vmatpush1.msra.mxu0 0.0
    %65 = vmatprep.subr.mxu0 0.0
    %66 = vmatpush1.msra.mxu0 0.0
    %67 = vmatprep.subr.mxu0 0.0
    %68 = vmatpush1.msra.mxu0 0.0
    %69 = vmatprep.subr.mxu0 0.0
    %70 = vmatpush1.msra.mxu0 0.0
    %71 = vmatprep.subr.mxu0 0.0
    %72 = vmatpush1.msra.mxu0 %v24
    %73 = vmatprep.subr.mxu0 0.0
    %74 = vmatpush1.msra.mxu0 %v23
    %75 = vmatprep.subr.mxu0 0.0
    %76 = vmatpush2.msra.mxu0 0.0
    %77 = vmatprep.subr.mxu0 0.0
    %78 = vmatpush2.msra.mxu0 0.0
    %79 = vmatprep.subr.mxu0 0.0
    %80 = vmatpush2.msra.mxu0 0.0
    %81 = vmatprep.subr.mxu0 0.0
    %82 = vmatpush2.msra.mxu0 0.0
    %83 = vmatprep.subr.mxu0 0.0
    %84 = vmatpush2.msra.mxu0 0.0
    %85 = vmatprep.subr.mxu0 0.0
    %86 = vmatpush2.msra.mxu0 0.0
    %87 = vmatprep.subr.mxu0 0.0
    %88 = vmatpush2.msra.mxu0 0.0
    %89 = vmatprep.subr.mxu0 0.0
    %90 = vmatpush2.msra.mxu0 0.0
    %91 = vmatprep.subr.mxu0 0.0
    %92 = vmatpush2.msra.mxu0 0.0
    %93 = vmatprep.subr.mxu0 0.0
    %94 = vmatpush2.msra.mxu0 0.0
    %95 = vmatprep.subr.mxu0 0.0
    %96 = vmatpush2.msra.mxu0 0.0
    %97 = vmatprep.subr.mxu0 0.0
    %98 = vmatpush2.msra.mxu0 0.0
    %99 = vmatprep.subr.mxu0 0.0
    %100 = vmatpush2.msra.mxu0 0.0
    %101 = vmatprep.subr.mxu0 0.0
    %102 = vmatpush2.msra.mxu0 0.0
    %103 = vmatprep.subr.mxu0 0.0
    %104 = vmatpush2.msra.mxu0 0.0
    %105 = vmatprep.subr.mxu0 0.0
    %106 = vmatpush2.msra.mxu0 0.0
    %107 = vmatprep.mubr.f32.mxu0 0.0
    %108 = vmatmul.mubr.f32.gmra.mxu0 %v38
    %v109 = vpop.f32.mrf.mxu0
    %v110 = vadd.f32 0.0, %v109
    %v111 = vpop.f32.mrf.mxu0
    %112 = vmatprep.mubr.f32.mxu0 0.0
    %113 = vmatmul.mubr.f32.gmra.mxu0 %v41
    %v114 = vpop.f32.mrf.mxu0
    %v115 = vadd.f32 0.0, %v114
    %v116 = vpop.f32.mrf.mxu0
    %117 = vdwg.mxu0
    %v118 = vmul.f32 %v110, 2.0
    %v119 = vmul.f32 %v115, 2.0
    %v120 = vsub.f32 %v118, %v35
    %v121 = vsub.f32 %v119, %v36
    %124 = vrot.lane.b32.xlu0 %v120, 16
    %v125 = vpop.permute.xlu0 %124
    %126 = vrot.lane.b32.xlu0 %v121, 16
    %v127 = vpop.permute.xlu0 %126
    %vm130 = vcmask 261248
    %131 = vst.msk [vmem:[#allocation5] sm:$0xff] %vm130, %v125
    %132 = vst.msk [vmem:[#allocation5 + $0x8] sm:$0xff] %vm130, %v127
    %s133 = scalar_lea.vmem [#allocation2], 16
    %v134 = vld [vmem:[%s133] sm:$0xff]
    %v135 = vld [vmem:[%s133 + $0x8] sm:$0xff]
    %138 = vrot.lane.b32.xlu0 %v134, 32
    %v139 = vpop.permute.xlu0 %138
    %140 = vrot.lane.b32.xlu0 %v135, 32
    %v141 = vpop.permute.xlu0 %140
    %vm144 = vcmask 392448
    %145 = vst.msk [vmem:[#allocation5] sm:$0xff] %vm144, %v139
    %146 = vst.msk [vmem:[#allocation5 + $0x8] sm:$0xff] %vm144, %v141
    %v147 = vsel %vm25, %v134, 0
    %v149 = vsel %vm25, %v135, 0
    %151 = vmatprep.subr.mxu0 0.0
    %152 = vmatpush1.msra.mxu0 0.0
    %153 = vmatprep.subr.mxu0 0.0
    %154 = vmatpush1.msra.mxu0 0.0
    %155 = vmatprep.subr.mxu0 0.0
    %156 = vmatpush1.msra.mxu0 0.0
    %157 = vmatprep.subr.mxu0 0.0
    %158 = vmatpush1.msra.mxu0 0.0
    %159 = vmatprep.subr.mxu0 0.0
    %160 = vmatpush1.msra.mxu0 0.0
    %161 = vmatprep.subr.mxu0 0.0
    %162 = vmatpush1.msra.mxu0 0.0
    %163 = vmatprep.subr.mxu0 0.0
    %164 = vmatpush1.msra.mxu0 0.0
    %165 = vmatprep.subr.mxu0 0.0
    %166 = vmatpush1.msra.mxu0 0.0
    %167 = vmatprep.subr.mxu0 0.0
    %168 = vmatpush1.msra.mxu0 0.0
    %169 = vmatprep.subr.mxu0 0.0
    %170 = vmatpush1.msra.mxu0 0.0
    %171 = vmatprep.subr.mxu0 0.0
    %172 = vmatpush1.msra.mxu0 0.0
    %173 = vmatprep.subr.mxu0 0.0
    %174 = vmatpush1.msra.mxu0 0.0
    %175 = vmatprep.subr.mxu0 0.0
    %176 = vmatpush1.msra.mxu0 0.0
    %177 = vmatprep.subr.mxu0 0.0
    %178 = vmatpush1.msra.mxu0 0.0
    %179 = vmatprep.subr.mxu0 0.0
    %180 = vmatpush1.msra.mxu0 %v135
    %181 = vmatprep.subr.mxu0 0.0
    %182 = vmatpush1.msra.mxu0 %v134
    %183 = vmatprep.subr.mxu0 0.0
    %184 = vmatpush2.msra.mxu0 0.0
    %185 = vmatprep.subr.mxu0 0.0
    %186 = vmatpush2.msra.mxu0 0.0
    %187 = vmatprep.subr.mxu0 0.0
    %188 = vmatpush2.msra.mxu0 0.0
    %189 = vmatprep.subr.mxu0 0.0
    %190 = vmatpush2.msra.mxu0 0.0
    %191 = vmatprep.subr.mxu0 0.0
    %192 = vmatpush2.msra.mxu0 0.0
    %193 = vmatprep.subr.mxu0 0.0
    %194 = vmatpush2.msra.mxu0 0.0
    %195 = vmatprep.subr.mxu0 0.0
    %196 = vmatpush2.msra.mxu0 0.0
    %197 = vmatprep.subr.mxu0 0.0
    %198 = vmatpush2.msra.mxu0 0.0
    %199 = vmatprep.subr.mxu0 0.0
    %200 = vmatpush2.msra.mxu0 0.0
    %201 = vmatprep.subr.mxu0 0.0
    %202 = vmatpush2.msra.mxu0 0.0
    %203 = vmatprep.subr.mxu0 0.0
    %204 = vmatpush2.msra.mxu0 0.0
    %205 = vmatprep.subr.mxu0 0.0
    %206 = vmatpush2.msra.mxu0 0.0
    %207 = vmatprep.subr.mxu0 0.0
    %208 = vmatpush2.msra.mxu0 0.0
    %209 = vmatprep.subr.mxu0 0.0
    %210 = vmatpush2.msra.mxu0 0.0
    %211 = vmatprep.subr.mxu0 0.0
    %212 = vmatpush2.msra.mxu0 0.0
    %213 = vmatprep.subr.mxu0 0.0
    %214 = vmatpush2.msra.mxu0 0.0
    %215 = vmatprep.mubr.f32.mxu0 0.0
    %216 = vmatmul.mubr.f32.gmra.mxu0 %v147
    %v217 = vpop.f32.mrf.mxu0
    %v218 = vadd.f32 0.0, %v217
    %v219 = vpop.f32.mrf.mxu0
    %220 = vmatprep.mubr.f32.mxu0 0.0
    %221 = vmatmul.mubr.f32.gmra.mxu0 %v149
    %v222 = vpop.f32.mrf.mxu0
    %v223 = vadd.f32 0.0, %v222
    %v224 = vpop.f32.mrf.mxu0
    %225 = vdwg.mxu0
    %v226 = vmul.f32 %v218, 2.0
    %v227 = vmul.f32 %v223, 2.0
    %v228 = vsub.f32 %v226, %v35
    %v229 = vsub.f32 %v227, %v36
    %232 = vrot.lane.b32.xlu0 %v228, 48
    %v233 = vpop.permute.xlu0 %232
    %234 = vrot.lane.b32.xlu0 %v229, 48
    %v235 = vpop.permute.xlu0 %234
    %vm238 = vcmask 523648
    %239 = vst.msk [vmem:[#allocation5] sm:$0xff] %vm238, %v233
    %240 = vst.msk [vmem:[#allocation5 + $0x8] sm:$0xff] %vm238, %v235
    // Predicated region
    $region10: #{tpu_custom_call.1} parent=1 // pred_check
      _
    $region11: #{tpu_custom_call.1} parent=1 // pred_check_branch
      %242 = sbr.rel (0) target = $region13
    $region12: #{tpu_custom_call.1} parent=1 // pred_region
      %s244 = ssub.s32 256, 256
      %245 = vsyncadd [#allocation4], %s244
      %s246 = sshll.u32 [#allocation5], 4
      %s247 = int_to_ptr.vmem [resolvable:$true] %s246
      %252 = dma.vmem_to_hbm [thread:$0]  %s247, 256, %s1, [#allocation4], 128, 128, 8
    $region13: #{tpu_custom_call.1} parent=1 // pred_fallthru
      _
    // Predicated region
    $region14: #{tpu_custom_call.1} parent=1 // pred_check
      _
    $region15: #{tpu_custom_call.1} parent=1 // pred_check_branch
      %254 = sbr.rel (0) target = $region17
    $region16: #{tpu_custom_call.1} parent=1 // pred_region
      %255 = dma.done [#allocation4], 256
    $region17: #{tpu_custom_call.1} parent=1 // pred_fallthru
      _
    %256 = vsyncpa [#allocation3], 1
    %257 = vsyncpa [#allocation4], 1

</llo_original>
